<compile_context>
chip_gen: v7x
topology: tpu7x:2x2x1
jax: 0.10.0
libtpu: 0.0.40
codegen_flags: <defaults>
</compile_context>

<pallas_src>
import jax
import jax.numpy as jnp
from jax.experimental import pallas as pl
from jax.experimental.pallas import tpu as pltpu

# Rows below this use the plain-jnp path (launch overhead > work).
_PALLAS_MIN_ROWS = 4096
_VMEM_LIMIT_BYTES = 32 * 1024 * 1024


def _proj_sigmoid_mask_kernel(x_ref, wt_ref, b_ref, mask_ref, o_ref):
    # x_ref: (tm, D), wt_ref: (K, D), b_ref: (K, 1), mask_ref: (1, tm), o_ref: (K, tm)
    # (K, D) contracted with (tm, D) on D -> (K, tm): lane-dense along tm, so the
    # store is a full-lane vst (not vst.msk).
    logits = jax.lax.dot_general(
        wt_ref[...], x_ref[...],
        dimension_numbers=(((1,), (1,)), ((), ())),
        preferred_element_type=jnp.float32,
    )
    mask = mask_ref[...].astype(jnp.float32)   # cast in-kernel, native dtype on HBM
    o_ref[...] = jax.nn.sigmoid(logits + b_ref[...]) * mask


def _choose_tm(n, d):
    """Row-tile size.

    The VMEM buffer for a (tm, D) f32 block is laid out on 128-lane tiles, so the
    padded per-buffer size is tm * max(D, 128) * 4 bytes. Target ~8 MiB per x
    buffer (double-buffered -> ~16 MiB, well inside the 32 MiB vmem limit we set,
    which itself fits v5e/v6e/v7x physical VMEM). Keep >= 2 blocks for large N so
    v7x's two TensorCores both get work. Tiled blocks must be 128-multiples along
    the lane dim (mask/output last dim).
    """
    padded_row_bytes = max(d, 128) * 4
    tm = (8 * 1024 * 1024) // padded_row_bytes
    if n > 4096:
        tm = min(tm, max(128, (n // 2 // 128) * 128))
    tm = max(128, (tm // 128) * 128)
    if n <= tm:
        return n  # single block: block dims equal full array dims (always legal)
    return tm


def _proj_sigmoid_mask_pallas(x2d, w, b, mask_row):
    """sigmoid(x2d @ w + b) * mask, returned lane-dense as (K, N).

    x2d:      (N, D) float32
    w:        (D, K) float32
    b:        (1, K) float32
    mask_row: (1, N) any dtype (cast to f32 inside the kernel)
    returns   (K, N) float32   (row k = head k over all N positions)
    """
    N, D = x2d.shape
    K = w.shape[1]
    tm = _choose_tm(N, D)
    grid = (pl.cdiv(N, tm),)  # no host-side padding; ragged last block is masked

    wt = jnp.transpose(w)        # (K, D)
    bt = jnp.reshape(b, (K, 1))  # (K, 1): broadcasts over the lane dim

    mask_bytes = N * jnp.dtype(mask_row.dtype).itemsize
    cost = pl.CostEstimate(
        flops=2 * N * D * K,
        transcendentals=N * K,
        bytes_accessed=N * D * 4 + mask_bytes + N * K * 4 + K * D * 4,
    )

    return pl.pallas_call(
        _proj_sigmoid_mask_kernel,
        out_shape=jax.ShapeDtypeStruct((K, N), jnp.float32),
        grid_spec=pltpu.PrefetchScalarGridSpec(
            num_scalar_prefetch=0,
            grid=grid,
            in_specs=[
                pl.BlockSpec((tm, D), lambda i: (i, 0)),   # x tile (streamed)
                pl.BlockSpec((K, D), lambda i: (0, 0)),    # weights (VMEM resident)
                pl.BlockSpec((K, 1), lambda i: (0, 0)),    # bias (VMEM resident)
                pl.BlockSpec((1, tm), lambda i: (0, i)),   # mask tile (lane-dense)
            ],
            out_specs=pl.BlockSpec((K, tm), lambda i: (0, i)),  # lane-dense output
        ),
        compiler_params=pltpu.CompilerParams(
            dimension_semantics=("parallel",),
            vmem_limit_bytes=_VMEM_LIMIT_BYTES,
        ),
        cost_estimate=cost,
    )(x2d, wt, bt, mask_row)


def _proj_sigmoid_mask_jnp(x2d, w, b, mask_row):
    """Plain-jnp fallback for tiny row counts (XLA fuses it; no kernel launch)."""
    logits = x2d @ w + b                                  # (N, K)
    out = jax.nn.sigmoid(logits) * mask_row.reshape(-1, 1).astype(jnp.float32)
    return jnp.transpose(out)                             # (K, N)


def _proj_sigmoid_mask(x2d, w, b, mask_row, *, force_pallas=False):
    N = x2d.shape[0]
    if force_pallas or N >= _PALLAS_MIN_ROWS:
        return _proj_sigmoid_mask_pallas(x2d, w, b, mask_row)
    return _proj_sigmoid_mask_jnp(x2d, w, b, mask_row)


def init_localization_params(key, D):
    """Deterministic synthetic parameters matching the PyTorch module's shapes.

    conv_layer_pm : Conv2d(D, 1, 1) -> weight (1, D, 1, 1), bias (1,)
    conv_layer_ps/pe/pa : Conv1d(D, 1, 1) -> weight (1, D, 1), bias (1,)
    Stored here as (D, 1) weight columns and (1, 1) biases.
    """
    ks = jax.random.split(key, 8)
    bound = 1.0 / jnp.sqrt(D)

    def u(k, shape):
        return jax.random.uniform(k, shape, jnp.float32, -bound, bound)

    return {
        "w_pm": u(ks[0], (D, 1)), "b_pm": u(ks[1], (1, 1)),
        "w_ps": u(ks[2], (D, 1)), "b_ps": u(ks[3], (1, 1)),
        "w_pe": u(ks[4], (D, 1)), "b_pe": u(ks[5], (1, 1)),
        "w_pa": u(ks[6], (D, 1)), "b_pa": u(ks[7], (1, 1)),
    }


@jax.jit
def localization_forward(params, f_m, f_b, length_mask, moment_mask):
    """Pallas-backed forward matching PyTorch Localization.forward semantics.

    f_m:         (B, T, T, D) float32
    f_b:         (B, L, D)    float32
    length_mask: (B, L)       (any numeric/bool dtype)
    moment_mask: (B, T, T)    (any numeric/bool dtype)
    returns p_m (B, T, T), p_s (B, L), p_e (B, L), p_a (B, L)
    """
    B, T1, T2, D = f_m.shape
    _, L, _ = f_b.shape

    # --- p_m: 1x1 Conv2d head (Pallas; this is the big streaming pass) ---
    # Note: f_m could be fed as bf16 to halve HBM traffic if the model tolerates
    # it; kept f32 here to match the PyTorch module exactly.
    fm2 = f_m.reshape(B * T1 * T2, D)
    mm_row = moment_mask.reshape(1, B * T1 * T2)          # native dtype, no host cast
    p_m = _proj_sigmoid_mask(fm2, params["w_pm"], params["b_pm"], mm_row,
                             force_pallas=True)           # (1, B*T1*T2)
    p_m = p_m.reshape(B, T1, T2)

    # --- p_s / p_e / p_a: three 1x1 Conv1d heads fused into one (D, 3) matmul.
    # B*L is usually tiny, so this avoids a second Pallas launch; it falls back
    # to the Pallas kernel automatically when B*L is large.
    fb2 = f_b.reshape(B * L, D)
    lm_row = length_mask.reshape(1, B * L)                # native dtype, no host cast
    w_b = jnp.concatenate([params["w_ps"], params["w_pe"], params["w_pa"]], axis=1)  # (D, 3)
    b_b = jnp.concatenate([params["b_ps"], params["b_pe"], params["b_pa"]], axis=1)  # (1, 3)
    out_b = _proj_sigmoid_mask(fb2, w_b, b_b, lm_row)     # (3, B*L)
    p_s = out_b[0].reshape(B, L)
    p_e = out_b[1].reshape(B, L)
    p_a = out_b[2].reshape(B, L)

    return p_m, p_s, p_e, p_a


def _reference_forward(params, f_m, f_b, length_mask, moment_mask):
    """Pure-JAX reference mirroring the PyTorch forward."""
    def head(x, w, b):
        return jax.nn.sigmoid(jnp.einsum("...d,dk->...k", x, w) + b[0])

    p_m = head(f_m, params["w_pm"], params["b_pm"])[..., 0] * moment_mask
    p_s = head(f_b, params["w_ps"], params["b_ps"])[..., 0] * length_mask
    p_e = head(f_b, params["w_pe"], params["b_pe"])[..., 0] * length_mask
    p_a = head(f_b, params["w_pa"], params["b_pa"])[..., 0] * length_mask
    return p_m, p_s, p_e, p_a


if __name__ == "__main__":
    # T=20 -> B*T*T = 800 rows: single-block Pallas path for f_m (grid=1),
    # tiny f_b branch (B*L=16) goes through the fused jnp path.
    B, T, L, D = 2, 20, 8, 32

    key = jax.random.PRNGKey(0)
    k_p, k_fm, k_fb, k_lm, k_mm = jax.random.split(key, 5)

    params = init_localization_params(k_p, D)
    f_m = jax.random.normal(k_fm, (B, T, T, D), jnp.float32)
    f_b = jax.random.normal(k_fb, (B, L, D), jnp.float32)
    length_mask = (jax.random.uniform(k_lm, (B, L)) > 0.3).astype(jnp.float32)
    moment_mask = (jax.random.uniform(k_mm, (B, T, T)) > 0.3).astype(jnp.float32)

    outs = localization_forward(params, f_m, f_b, length_mask, moment_mask)
    outs = jax.block_until_ready(outs)

    refs = _reference_forward(params, f_m, f_b, length_mask, moment_mask)
    for o, r in zip(outs, refs):
        assert o.shape == r.shape
        assert jnp.allclose(o, r, atol=1e-5, rtol=1e-5), "mismatch vs reference"

    print("KERNEL_OK")
</pallas_src>

<mosaic_0001>
module attributes {stable_mosaic.version = 11 : i64} {
  func.func @_proj_sigmoid_mask_kernel(%arg0: i32, %arg1: memref<800x32xf32, #tpu.memory_space<vmem>>, %arg2: memref<1x32xf32, #tpu.memory_space<vmem>>, %arg3: memref<1x1xf32, #tpu.memory_space<vmem>>, %arg4: memref<1x800xf32, #tpu.memory_space<vmem>>, %arg5: memref<1x800xf32, #tpu.memory_space<vmem>>) attributes {dimension_semantics = [#tpu.dimension_semantics<parallel>], iteration_bounds = array<i64: 1>, scalar_prefetch = 0 : i64, scratch_operands = 0 : i64, tpu.core_type = #tpu.core_type<tc>, window_params = [{transform_indices = @transform_0, window_bounds = array<i64: 800, 32>}, {pipeline_mode = #tpu.pipeline_mode<synchronous>, transform_indices = @transform_1, window_bounds = array<i64: 1, 32>}, {pipeline_mode = #tpu.pipeline_mode<synchronous>, transform_indices = @transform_2, window_bounds = array<i64: 1, 1>}, {transform_indices = @transform_3, window_bounds = array<i64: 1, 800>}, {transform_indices = @transform_4, window_bounds = array<i64: 1, 800>}]} {
    %c0 = arith.constant 0 : index
    %c0_0 = arith.constant 0 : index
    %0 = vector.load %arg2[%c0, %c0_0] : memref<1x32xf32, #tpu.memory_space<vmem>>, vector<1x32xf32>
    %c0_1 = arith.constant 0 : index
    %c0_2 = arith.constant 0 : index
    %1 = vector.load %arg1[%c0_1, %c0_2] : memref<800x32xf32, #tpu.memory_space<vmem>>, vector<800x32xf32>
    %cst = arith.constant dense<0.000000e+00> : vector<1x800xf32>
    %2 = tpu.matmul %0, %1, %cst {dimension_numbers = #tpu.dot_dimension_numbers<[1], [1], [0], [0], [0, 0, 1, 0], [], []>} : vector<1x32xf32>, vector<800x32xf32>, vector<1x800xf32> -> vector<1x800xf32>
    %c0_3 = arith.constant 0 : index
    %c0_4 = arith.constant 0 : index
    %3 = vector.load %arg4[%c0_3, %c0_4] : memref<1x800xf32, #tpu.memory_space<vmem>>, vector<1x800xf32>
    %c0_5 = arith.constant 0 : index
    %c0_6 = arith.constant 0 : index
    %4 = vector.load %arg3[%c0_5, %c0_6] : memref<1x1xf32, #tpu.memory_space<vmem>>, vector<1x1xf32>
    %5 = vector.broadcast %4 : vector<1x1xf32> to vector<1x800xf32>
    %6 = arith.addf %2, %5 : vector<1x800xf32>
    %7 = arith.negf %6 : vector<1x800xf32>
    %8 = math.exp %7 : vector<1x800xf32>
    %cst_7 = arith.constant 1.000000e+00 : f32
    %9 = vector.broadcast %cst_7 : f32 to vector<1x800xf32>
    %10 = arith.addf %9, %8 : vector<1x800xf32>
    %11 = arith.divf %9, %10 : vector<1x800xf32>
    %12 = arith.mulf %11, %3 : vector<1x800xf32>
    %c0_8 = arith.constant 0 : index
    %c0_9 = arith.constant 0 : index
    %13 = vector.load %arg5[%c0_8, %c0_9] : memref<1x800xf32, #tpu.memory_space<vmem>>, vector<1x800xf32>
    tpu.vector_store %arg5[%c0_8, %c0_9], %12 {strides = array<i32>} : memref<1x800xf32, #tpu.memory_space<vmem>>, vector<1x800xf32>,
    return
  }
  func.func @transform_0(%arg0: i32) -> (i32, i32) {
    %c0_i32 = arith.constant 0 : i32
    %c0_i32_0 = arith.constant 0 : i32
    return %arg0, %c0_i32 : i32, i32
  }
  func.func @transform_1(%arg0: i32) -> (i32, i32) {
    %c0_i32 = arith.constant 0 : i32
    %c0_i32_0 = arith.constant 0 : i32
    %c0_i32_1 = arith.constant 0 : i32
    return %c0_i32, %c0_i32_0 : i32, i32
  }
  func.func @transform_2(%arg0: i32) -> (i32, i32) {
    %c0_i32 = arith.constant 0 : i32
    %c0_i32_0 = arith.constant 0 : i32
    %c0_i32_1 = arith.constant 0 : i32
    return %c0_i32, %c0_i32_0 : i32, i32
  }
  func.func @transform_3(%arg0: i32) -> (i32, i32) {
    %c0_i32 = arith.constant 0 : i32
    %c0_i32_0 = arith.constant 0 : i32
    return %c0_i32, %arg0 : i32, i32
  }
  func.func @transform_4(%arg0: i32) -> (i32, i32) {
    %c0_i32 = arith.constant 0 : i32
    %c0_i32_0 = arith.constant 0 : i32
    return %c0_i32, %arg0 : i32, i32
  }
}

</mosaic_0001>

<llo_original>
// kernel: mul.5
$region0: #{mul.5}
  %s0 = inlined_call_operand.vmem [shape: f32[2,8], index: 0, kind: input, shape index: {}]
  %s1 = inlined_call_operand.vmem [shape: f32[16], index: 1, kind: output, shape index: {}]
  $region1: #{mul.5} parent=0
    #allocation0 [shape = 'u8[4096]{0}', space=vmem, size = 0x1000, scoped, tag = 'scoped mem for output reshape']
    #allocation1 [shape = 'u8[4096]{0}', space=vmem, size = 0x1000, scoped, tag = 'scoped mem for input reshape']
    %s3 = sshllo.u32 0, 2
    %v4 = vld [vmem:[%s0] sm:%s3]
    %5 = vst [vmem:[#allocation1] sm:%s3] %v4
    %v6 = vld [vmem:[#allocation1] sm:$0x1]
    %vm7 = vcmask 64512
    %8 = vst.msk [vmem:[#allocation0] sm:$0x1] %vm7, %v6
    %s9 = scalar_lea.vmem [#allocation1], 1
    %v10 = vld [vmem:[%s9] sm:$0x1]
    %11 = vrot.lane.b32.xlu0 %v10, 8
    %v12 = vpop.permute.xlu0 %11
    %vm13 = vcmask 130112
    %14 = vst.msk [vmem:[#allocation0] sm:$0x1] %vm13, %v12
    %s16 = sshllo.u32 0, 1
    %v18 = vld [vmem:[#allocation0] sm:%s16]
    %s19 = sshllo.u32 0, 1
    %20 = vst [vmem:[%s1] sm:%s19] %v18

// kernel: squeeze.3
$region0: #{squeeze.3}
  %s0 = inlined_call_operand.vmem [shape: f32[16], index: 0, kind: input, shape index: {}]
  %s1 = inlined_call_operand.hbm [shape: f32[2,8], index: 1, kind: output, shape index: {}]
  $region1: #{squeeze.3} parent=0
    #allocation0 [shape = 'u8[1024]{0}', space=vmem, size = 0x400, scoped, tag = 'operand span for operand 1']
    #allocation1 [shape = 's32[1]{0}', space=sflag, size = 0x4, scoped, tag = 'scoped memory for squeeze.3']
    #allocation2 [shape = 'u8[4096]{0}', space=vmem, size = 0x1000, scoped, tag = 'scoped mem for output reshape']
    #allocation3 [shape = 'u8[4096]{0}', space=vmem, size = 0x1000, scoped, tag = 'scoped mem for input reshape']
    %2 = vsyncpa [#allocation1], 0
    %s4 = sshllo.u32 0, 1
    %v5 = vld [vmem:[%s0] sm:%s4]
    %6 = vst [vmem:[#allocation3] sm:%s4] %v5
    %v7 = vld [vmem:[#allocation3] sm:$0x1]
    %vm8 = vcmask 64512
    %9 = vst.msk [vmem:[#allocation2] sm:$0x1] %vm8, %v7
    %v10 = vld [vmem:[#allocation3] sm:$0x1]
    %11 = vrot.lane.b32.xlu0 %v10, 120
    %v12 = vpop.permute.xlu0 %11
    %vm13 = vcmask 64512
    %s14 = scalar_lea.vmem [#allocation2], 1
    %15 = vst.msk [vmem:[%s14] sm:$0x1] %vm13, %v12
    %s17 = sshllo.u32 0, 2
    %v19 = vld [vmem:[#allocation2] sm:%s17]
    %s20 = sshllo.u32 0, 2
    %21 = vst [vmem:[#allocation0] sm:%s20] %v19
    %s23 = ssub.s32 32, 32
    %24 = vsyncadd [#allocation1], %s23
    %s26 = sshll.u32 [#allocation0], 4
    %s27 = int_to_ptr.vmem [resolvable:$true] %s26
    %29 = dma.vmem_to_hbm [thread:$0]  %s27, 32, %s1, [#allocation1]
    %30 = dma.done [#allocation1], 32
    %31 = vsyncpa [#allocation1], 1

// kernel: localization_forward.1
$region0: #{localization_forward.1}
  #allocation0 [shape = 'u32[]', space=smem, size = 0x4, offset = 0x4, fixed_abs, tag = 'smem constant byte address 0x4 - core index']
  #allocation1 [shape = 'u32[144,128]{1,0:T(1,128)}', space=vmem, size = 0x12000, scoped, tag = 'internal scratch']
  #allocation2 [shape = 'f32[1,1]{1,0:T(1,128)S(1)}', space=vmem, size = 0x200, scoped, tag = 'scoped memory for localization_forward.1']
  %s0 = inlined_call_operand.vmem [shape: f32[800,32], index: 0, kind: input, shape index: {}]
  %s1 = inlined_call_operand.vmem [shape: f32[1,32], index: 1, kind: input, shape index: {}]
  %s2 = inlined_call_operand.<no memory space> [shape: f32[1,1], index: 2, kind: input, shape index: {}]
  %s3 = inlined_call_operand.vmem [shape: f32[1,800], index: 3, kind: input, shape index: {}]
  %s4 = inlined_call_operand.vmem [shape: f32[1,800], index: 4, kind: output, shape index: {}]
  %s5 = sld [smem:[#allocation0]]
  $region26: #{localization_forward.1} parent=0
    _
  %s7 = ssub.s32 1, %s5
  %s8 = scalar_select 0, %s7, %s5
  %v9 = vstv %s2
  %10 = vst [vmem:[#allocation2] sm:$0x1] %v9
  // Predicated region
  $region2: #{localization_forward.1} parent=0 // pred_check
    _
  $region3: #{localization_forward.1} parent=0 // pred_check_branch
    %12 = sbr.rel (0) target = $region5
  $region4: #{localization_forward.1} parent=0 // pred_region
    _
  $region5: #{localization_forward.1} parent=0 // pred_fallthru
    _
  // Predicated region
  $region6: #{localization_forward.1} parent=0 // pred_check
    _
  $region7: #{localization_forward.1} parent=0 // pred_check_branch
    %14 = sbr.rel (0) target = $region9
  $region8: #{localization_forward.1} parent=0 // pred_region
    _
  $region9: #{localization_forward.1} parent=0 // pred_fallthru
    _
  // Predicated region
  $region10: #{localization_forward.1} parent=0 // pred_check
    _
  $region11: #{localization_forward.1} parent=0 // pred_check_branch
    %16 = sbr.rel (0) target = $region13
  $region12: #{localization_forward.1} parent=0 // pred_region
    _
  $region13: #{localization_forward.1} parent=0 // pred_fallthru
    _
  // Predicated region
  $region14: #{localization_forward.1} parent=0 // pred_check
    _
  $region15: #{localization_forward.1} parent=0 // pred_check_branch
    %18 = sbr.rel (0) target = $region17
  $region16: #{localization_forward.1} parent=0 // pred_region
    _
  $region17: #{localization_forward.1} parent=0 // pred_fallthru
    _
  %v19 = vld [vmem:[%s1] sm:$0x1]
  %v20 = vld [vmem:[%s0] sm:$0xff]
  %v21 = vld [vmem:[%s0 + $0x8] sm:$0xff]
  %v22 = vld [vmem:[%s0 + $0x10] sm:$0xff]
  %v23 = vld [vmem:[%s0 + $0x18] sm:$0xff]
  %v24 = vld [vmem:[%s0 + $0x20] sm:$0xff]
  %v25 = vld [vmem:[%s0 + $0x28] sm:$0xff]
  %v26 = vld [vmem:[%s0 + $0x30] sm:$0xff]
  %v27 = vld [vmem:[%s0 + $0x38] sm:$0xff]
  %v28 = vld [vmem:[%s0 + $0x40] sm:$0xff]
  %v29 = vld [vmem:[%s0 + $0x48] sm:$0xff]
  %v30 = vld [vmem:[%s0 + $0x50] sm:$0xff]
  %v31 = vld [vmem:[%s0 + $0x58] sm:$0xff]
  %v32 = vld [vmem:[%s0 + $0x60] sm:$0xff]
  %v33 = vld [vmem:[%s0 + $0x68] sm:$0xff]
  %v34 = vld [vmem:[%s0 + $0x70] sm:$0xff]
  %v35 = vld [vmem:[%s0 + $0x78] sm:$0xff]
  %v36 = vld [vmem:[%s0 + $0x80] sm:$0xff]
  %v37 = vld [vmem:[%s0 + $0x88] sm:$0xff]
  %v38 = vld [vmem:[%s0 + $0x90] sm:$0xff]
  %v39 = vld [vmem:[%s0 + $0x98] sm:$0xff]
  %v40 = vld [vmem:[%s0 + $0xa0] sm:$0xff]
  %v41 = vld [vmem:[%s0 + $0xa8] sm:$0xff]
  %v42 = vld [vmem:[%s0 + $0xb0] sm:$0xff]
  %v43 = vld [vmem:[%s0 + $0xb8] sm:$0xff]
  %v44 = vld [vmem:[%s0 + $0xc0] sm:$0xff]
  %v45 = vld [vmem:[%s0 + $0xc8] sm:$0xff]
  %v46 = vld [vmem:[%s0 + $0xd0] sm:$0xff]
  %v47 = vld [vmem:[%s0 + $0xd8] sm:$0xff]
  %v48 = vld [vmem:[%s0 + $0xe0] sm:$0xff]
  %v49 = vld [vmem:[%s0 + $0xe8] sm:$0xff]
  %v50 = vld [vmem:[%s0 + $0xf0] sm:$0xff]
  %v51 = vld [vmem:[%s0 + $0xf8] sm:$0xff]
  %v52 = vld [vmem:[%s0 + $0x100] sm:$0xff]
  %v53 = vld [vmem:[%s0 + $0x108] sm:$0xff]
  %v54 = vld [vmem:[%s0 + $0x110] sm:$0xff]
  %v55 = vld [vmem:[%s0 + $0x118] sm:$0xff]
  %v56 = vld [vmem:[%s0 + $0x120] sm:$0xff]
  %v57 = vld [vmem:[%s0 + $0x128] sm:$0xff]
  %v58 = vld [vmem:[%s0 + $0x130] sm:$0xff]
  %v59 = vld [vmem:[%s0 + $0x138] sm:$0xff]
  %v60 = vld [vmem:[%s0 + $0x140] sm:$0xff]
  %v61 = vld [vmem:[%s0 + $0x148] sm:$0xff]
  %v62 = vld [vmem:[%s0 + $0x150] sm:$0xff]
  %v63 = vld [vmem:[%s0 + $0x158] sm:$0xff]
  %v64 = vld [vmem:[%s0 + $0x160] sm:$0xff]
  %v65 = vld [vmem:[%s0 + $0x168] sm:$0xff]
  %v66 = vld [vmem:[%s0 + $0x170] sm:$0xff]
  %v67 = vld [vmem:[%s0 + $0x178] sm:$0xff]
  %v68 = vld [vmem:[%s0 + $0x180] sm:$0xff]
  %v69 = vld [vmem:[%s0 + $0x188] sm:$0xff]
  %v70 = vld [vmem:[%s0 + $0x190] sm:$0xff]
  %v71 = vld [vmem:[%s0 + $0x198] sm:$0xff]
  %v72 = vld [vmem:[%s0 + $0x1a0] sm:$0xff]
  %v73 = vld [vmem:[%s0 + $0x1a8] sm:$0xff]
  %v74 = vld [vmem:[%s0 + $0x1b0] sm:$0xff]
  %v75 = vld [vmem:[%s0 + $0x1b8] sm:$0xff]
  %v76 = vld [vmem:[%s0 + $0x1c0] sm:$0xff]
  %v77 = vld [vmem:[%s0 + $0x1c8] sm:$0xff]
  %v78 = vld [vmem:[%s0 + $0x1d0] sm:$0xff]
  %v79 = vld [vmem:[%s0 + $0x1d8] sm:$0xff]
  %v80 = vld [vmem:[%s0 + $0x1e0] sm:$0xff]
  %v81 = vld [vmem:[%s0 + $0x1e8] sm:$0xff]
  %v82 = vld [vmem:[%s0 + $0x1f0] sm:$0xff]
  %v83 = vld [vmem:[%s0 + $0x1f8] sm:$0xff]
  %v84 = vld [vmem:[%s0 + $0x200] sm:$0xff]
  %v85 = vld [vmem:[%s0 + $0x208] sm:$0xff]
  %v86 = vld [vmem:[%s0 + $0x210] sm:$0xff]
  %v87 = vld [vmem:[%s0 + $0x218] sm:$0xff]
  %v88 = vld [vmem:[%s0 + $0x220] sm:$0xff]
  %v89 = vld [vmem:[%s0 + $0x228] sm:$0xff]
  %v90 = vld [vmem:[%s0 + $0x230] sm:$0xff]
  %v91 = vld [vmem:[%s0 + $0x238] sm:$0xff]
  %v92 = vld [vmem:[%s0 + $0x240] sm:$0xff]
  %v93 = vld [vmem:[%s0 + $0x248] sm:$0xff]
  %v94 = vld [vmem:[%s0 + $0x250] sm:$0xff]
  %v95 = vld [vmem:[%s0 + $0x258] sm:$0xff]
  %v96 = vld [vmem:[%s0 + $0x260] sm:$0xff]
  %v97 = vld [vmem:[%s0 + $0x268] sm:$0xff]
  %v98 = vld [vmem:[%s0 + $0x270] sm:$0xff]
  %v99 = vld [vmem:[%s0 + $0x278] sm:$0xff]
  %v100 = vld [vmem:[%s0 + $0x280] sm:$0xff]
  %v101 = vld [vmem:[%s0 + $0x288] sm:$0xff]
  %v102 = vld [vmem:[%s0 + $0x290] sm:$0xff]
  %v103 = vld [vmem:[%s0 + $0x298] sm:$0xff]
  %v104 = vld [vmem:[%s0 + $0x2a0] sm:$0xff]
  %v105 = vld [vmem:[%s0 + $0x2a8] sm:$0xff]
  %v106 = vld [vmem:[%s0 + $0x2b0] sm:$0xff]
  %v107 = vld [vmem:[%s0 + $0x2b8] sm:$0xff]
  %v108 = vld [vmem:[%s0 + $0x2c0] sm:$0xff]
  %v109 = vld [vmem:[%s0 + $0x2c8] sm:$0xff]
  %v110 = vld [vmem:[%s0 + $0x2d0] sm:$0xff]
  %v111 = vld [vmem:[%s0 + $0x2d8] sm:$0xff]
  %v112 = vld [vmem:[%s0 + $0x2e0] sm:$0xff]
  %v113 = vld [vmem:[%s0 + $0x2e8] sm:$0xff]
  %v114 = vld [vmem:[%s0 + $0x2f0] sm:$0xff]
  %v115 = vld [vmem:[%s0 + $0x2f8] sm:$0xff]
  %v116 = vld [vmem:[%s0 + $0x300] sm:$0xff]
  %v117 = vld [vmem:[%s0 + $0x308] sm:$0xff]
  %v118 = vld [vmem:[%s0 + $0x310] sm:$0xff]
  %v119 = vld [vmem:[%s0 + $0x318] sm:$0xff]
  %v120 = vld [vmem:[%s3] sm:$0x7f]
  %v121 = vld [vmem:[#allocation2] sm:$0x1]
  %123 = vset.pattern.permute.xlu0 0
  %124 = vperm.xlu0 %123, %v121
  %v125 = vpop.permute.xlu0 %124
  %v127 = vlaneseq
  %v128 = vshrl.u32 %v127, 7
  %v129 = vsub.s32 0, %v128
  %v130 = vrot.slane %v125, %v129
  %vm131 = vcmask 261120
  %v133 = vsel %vm131, %v19, 0
  %v136 = vsel %vm131, %v20, 0
  %v139 = vsel %vm131, %v21, 0
  %v142 = vsel %vm131, %v22, 0
  %v145 = vsel %vm131, %v23, 0
  %v148 = vsel %vm131, %v24, 0
  %v151 = vsel %vm131, %v25, 0
  %v154 = vsel %vm131, %v26, 0
  %v157 = vsel %vm131, %v27, 0
  %v160 = vsel %vm131, %v28, 0
  %v163 = vsel %vm131, %v29, 0
  %v166 = vsel %vm131, %v30, 0
  %v169 = vsel %vm131, %v31, 0
  %v172 = vsel %vm131, %v32, 0
  %v175 = vsel %vm131, %v33, 0
  %v178 = vsel %vm131, %v34, 0
  %v181 = vsel %vm131, %v35, 0
  %v184 = vsel %vm131, %v36, 0
  %v187 = vsel %vm131, %v37, 0
  %v190 = vsel %vm131, %v38, 0
  %v193 = vsel %vm131, %v39, 0
  %v196 = vsel %vm131, %v40, 0
  %v199 = vsel %vm131, %v41, 0
  %v202 = vsel %vm131, %v42, 0
  %v205 = vsel %vm131, %v43, 0
  %v208 = vsel %vm131, %v44, 0
  %v211 = vsel %vm131, %v45, 0
  %v214 = vsel %vm131, %v46, 0
  %v217 = vsel %vm131, %v47, 0
  %v220 = vsel %vm131, %v48, 0
  %v223 = vsel %vm131, %v49, 0
  %v226 = vsel %vm131, %v50, 0
  %v229 = vsel %vm131, %v51, 0
  %v232 = vsel %vm131, %v52, 0
  %v235 = vsel %vm131, %v53, 0
  %v238 = vsel %vm131, %v54, 0
  %v241 = vsel %vm131, %v55, 0
  %v244 = vsel %vm131, %v56, 0
  %v247 = vsel %vm131, %v57, 0
  %v250 = vsel %vm131, %v58, 0
  %v253 = vsel %vm131, %v59, 0
  %v256 = vsel %vm131, %v60, 0
  %v259 = vsel %vm131, %v61, 0
  %v262 = vsel %vm131, %v62, 0
  %v265 = vsel %vm131, %v63, 0
  %v268 = vsel %vm131, %v64, 0
  %v271 = vsel %vm131, %v65, 0
  %v274 = vsel %vm131, %v66, 0
  %v277 = vsel %vm131, %v67, 0
  %v280 = vsel %vm131, %v68, 0
  %v283 = vsel %vm131, %v69, 0
  %v286 = vsel %vm131, %v70, 0
  %v289 = vsel %vm131, %v71, 0
  %v292 = vsel %vm131, %v72, 0
  %v295 = vsel %vm131, %v73, 0
  %v298 = vsel %vm131, %v74, 0
  %v301 = vsel %vm131, %v75, 0
  %v304 = vsel %vm131, %v76, 0
  %v307 = vsel %vm131, %v77, 0
  %v310 = vsel %vm131, %v78, 0
  %v313 = vsel %vm131, %v79, 0
  %v316 = vsel %vm131, %v80, 0
  %v319 = vsel %vm131, %v81, 0
  %v322 = vsel %vm131, %v82, 0
  %v325 = vsel %vm131, %v83, 0
  %v328 = vsel %vm131, %v84, 0
  %v331 = vsel %vm131, %v85, 0
  %v334 = vsel %vm131, %v86, 0
  %v337 = vsel %vm131, %v87, 0
  %v340 = vsel %vm131, %v88, 0
  %v343 = vsel %vm131, %v89, 0
  %v346 = vsel %vm131, %v90, 0
  %v349 = vsel %vm131, %v91, 0
  %v352 = vsel %vm131, %v92, 0
  %v355 = vsel %vm131, %v93, 0
  %v358 = vsel %vm131, %v94, 0
  %v361 = vsel %vm131, %v95, 0
  %v364 = vsel %vm131, %v96, 0
  %v367 = vsel %vm131, %v97, 0
  %v370 = vsel %vm131, %v98, 0
  %v373 = vsel %vm131, %v99, 0
  %v376 = vsel %vm131, %v100, 0
  %v379 = vsel %vm131, %v101, 0
  %v382 = vsel %vm131, %v102, 0
  %v385 = vsel %vm131, %v103, 0
  %v388 = vsel %vm131, %v104, 0
  %v391 = vsel %vm131, %v105, 0
  %v394 = vsel %vm131, %v106, 0
  %v397 = vsel %vm131, %v107, 0
  %v400 = vsel %vm131, %v108, 0
  %v403 = vsel %vm131, %v109, 0
  %v406 = vsel %vm131, %v110, 0
  %v409 = vsel %vm131, %v111, 0
  %v412 = vsel %vm131, %v112, 0
  %v415 = vsel %vm131, %v113, 0
  %v418 = vsel %vm131, %v114, 0
  %v421 = vsel %vm131, %v115, 0
  %v424 = vsel %vm131, %v116, 0
  %v427 = vsel %vm131, %v117, 0
  %v430 = vsel %vm131, %v118, 0
  %v433 = vsel %vm131, %v119, 0
  %435 = vmatprep.subr.mxu0 0.0
  %436 = vmatpush1.xpose.msra.mxu0 %v136
  %437 = vmatprep.subr.mxu0 0.0
  %438 = vmatpush1.xpose.msra.mxu0 %v139
  %439 = vmatprep.subr.mxu0 0.0
  %440 = vmatpush1.xpose.msra.mxu0 %v142
  %441 = vmatprep.subr.mxu0 0.0
  %442 = vmatpush1.xpose.msra.mxu0 %v145
  %443 = vmatprep.subr.mxu0 0.0
  %444 = vmatpush1.xpose.msra.mxu0 %v148
  %445 = vmatprep.subr.mxu0 0.0
  %446 = vmatpush1.xpose.msra.mxu0 %v151
  %447 = vmatprep.subr.mxu0 0.0
  %448 = vmatpush1.xpose.msra.mxu0 %v154
  %449 = vmatprep.subr.mxu0 0.0
  %450 = vmatpush1.xpose.msra.mxu0 %v157
  %451 = vmatprep.subr.mxu0 0.0
  %452 = vmatpush1.xpose.msra.mxu0 %v160
  %453 = vmatprep.subr.mxu0 0.0
  %454 = vmatpush1.xpose.msra.mxu0 %v163
  %455 = vmatprep.subr.mxu0 0.0
  %456 = vmatpush1.xpose.msra.mxu0 %v166
  %457 = vmatprep.subr.mxu0 0.0
  %458 = vmatpush1.xpose.msra.mxu0 %v169
  %459 = vmatprep.subr.mxu0 0.0
  %460 = vmatpush1.xpose.msra.mxu0 %v172
  %461 = vmatprep.subr.mxu0 0.0
  %462 = vmatpush1.xpose.msra.mxu0 %v175
  %463 = vmatprep.subr.mxu0 0.0
  %464 = vmatpush1.xpose.msra.mxu0 %v178
  %465 = vmatprep.subr.mxu0 0.0
  %466 = vmatpush1.xpose.msra.mxu0 %v181
  %467 = vmatprep.subr.mxu0 0.0
  %468 = vmatpush1.xpose.msra.mxu0 %v184
  %469 = vmatprep.subr.mxu0 0.0
  %470 = vmatpush1.xpose.msra.mxu0 %v187
  %471 = vmatprep.subr.mxu0 0.0
  %472 = vmatpush1.xpose.msra.mxu0 %v190
  %473 = vmatprep.subr.mxu0 0.0
  %474 = vmatpush1.xpose.msra.mxu0 %v193
  %475 = vmatprep.subr.mxu0 0.0
  %476 = vmatpush1.xpose.msra.mxu0 %v196
  %477 = vmatprep.subr.mxu0 0.0
  %478 = vmatpush1.xpose.msra.mxu0 %v199
  %479 = vmatprep.subr.mxu0 0.0
  %480 = vmatpush1.xpose.msra.mxu0 %v202
  %481 = vmatprep.subr.mxu0 0.0
  %482 = vmatpush1.xpose.msra.mxu0 %v205
  %483 = vmatprep.subr.mxu0 0.0
  %484 = vmatpush1.xpose.msra.mxu0 %v208
  %485 = vmatprep.subr.mxu0 0.0
  %486 = vmatpush1.xpose.msra.mxu0 %v211
  %487 = vmatprep.subr.mxu0 0.0
  %488 = vmatpush1.xpose.msra.mxu0 %v214
  %489 = vmatprep.subr.mxu0 0.0
  %490 = vmatpush1.xpose.msra.mxu0 %v217
  %491 = vmatprep.subr.mxu0 0.0
  %492 = vmatpush1.xpose.msra.mxu0 %v220
  %493 = vmatprep.subr.mxu0 0.0
  %494 = vmatpush1.xpose.msra.mxu0 %v223
  %495 = vmatprep.subr.mxu0 0.0
  %496 = vmatpush1.xpose.msra.mxu0 %v226
  %497 = vmatprep.subr.mxu0 0.0
  %498 = vmatpush1.xpose.msra.mxu0 %v229
  %499 = vmatprep.mubr.f32.mxu0 0.0
  %500 = vmatmul.mubr.f32.gmra.mrb[0].mxu0 %v133
  %v501 = vpop.f32.mrb[0].mxu0
  %v502 = vadd.f32 %v130, %v501
  %v503 = vpop.f32.mrb[0].mxu0
  %v504 = vadd.f32 %v130, %v503
  %505 = vdwg.mxu0
  %506 = vmatprep.subr.mxu0 0.0
  %507 = vmatpush1.xpose.msra.mxu0 %v232
  %508 = vmatprep.subr.mxu0 0.0
  %509 = vmatpush1.xpose.msra.mxu0 %v235
  %510 = vmatprep.subr.mxu0 0.0
  %511 = vmatpush1.xpose.msra.mxu0 %v238
  %512 = vmatprep.subr.mxu0 0.0
  %513 = vmatpush1.xpose.msra.mxu0 %v241
  %514 = vmatprep.subr.mxu0 0.0
  %515 = vmatpush1.xpose.msra.mxu0 %v244
  %516 = vmatprep.subr.mxu0 0.0
  %517 = vmatpush1.xpose.msra.mxu0 %v247
  %518 = vmatprep.subr.mxu0 0.0
  %519 = vmatpush1.xpose.msra.mxu0 %v250
  %520 = vmatprep.subr.mxu0 0.0
  %521 = vmatpush1.xpose.msra.mxu0 %v253
  %522 = vmatprep.subr.mxu0 0.0
  %523 = vmatpush1.xpose.msra.mxu0 %v256
  %524 = vmatprep.subr.mxu0 0.0
  %525 = vmatpush1.xpose.msra.mxu0 %v259
  %526 = vmatprep.subr.mxu0 0.0
  %527 = vmatpush1.xpose.msra.mxu0 %v262
  %528 = vmatprep.subr.mxu0 0.0
  %529 = vmatpush1.xpose.msra.mxu0 %v265
  %530 = vmatprep.subr.mxu0 0.0
  %531 = vmatpush1.xpose.msra.mxu0 %v268
  %532 = vmatprep.subr.mxu0 0.0
  %533 = vmatpush1.xpose.msra.mxu0 %v271
  %534 = vmatprep.subr.mxu0 0.0
  %535 = vmatpush1.xpose.msra.mxu0 %v274
  %536 = vmatprep.subr.mxu0 0.0
  %537 = vmatpush1.xpose.msra.mxu0 %v277
  %538 = vmatprep.subr.mxu0 0.0
  %539 = vmatpush1.xpose.msra.mxu0 %v280
  %540 = vmatprep.subr.mxu0 0.0
  %541 = vmatpush1.xpose.msra.mxu0 %v283
  %542 = vmatprep.subr.mxu0 0.0
  %543 = vmatpush1.xpose.msra.mxu0 %v286
  %544 = vmatprep.subr.mxu0 0.0
  %545 = vmatpush1.xpose.msra.mxu0 %v289
  %546 = vmatprep.subr.mxu0 0.0
  %547 = vmatpush1.xpose.msra.mxu0 %v292
  %548 = vmatprep.subr.mxu0 0.0
  %549 = vmatpush1.xpose.msra.mxu0 %v295
  %550 = vmatprep.subr.mxu0 0.0
  %551 = vmatpush1.xpose.msra.mxu0 %v298
  %552 = vmatprep.subr.mxu0 0.0
  %553 = vmatpush1.xpose.msra.mxu0 %v301
  %554 = vmatprep.subr.mxu0 0.0
  %555 = vmatpush1.xpose.msra.mxu0 %v304
  %556 = vmatprep.subr.mxu0 0.0
  %557 = vmatpush1.xpose.msra.mxu0 %v307
  %558 = vmatprep.subr.mxu0 0.0
  %559 = vmatpush1.xpose.msra.mxu0 %v310
  %560 = vmatprep.subr.mxu0 0.0
  %561 = vmatpush1.xpose.msra.mxu0 %v313
  %562 = vmatprep.subr.mxu0 0.0
  %563 = vmatpush1.xpose.msra.mxu0 %v316
  %564 = vmatprep.subr.mxu0 0.0
  %565 = vmatpush1.xpose.msra.mxu0 %v319
  %566 = vmatprep.subr.mxu0 0.0
  %567 = vmatpush1.xpose.msra.mxu0 %v322
  %568 = vmatprep.subr.mxu0 0.0
  %569 = vmatpush1.xpose.msra.mxu0 %v325
  %570 = vmatprep.mubr.f32.mxu0 0.0
  %571 = vmatmul.mubr.f32.gmra.mrb[0].mxu0 %v133
  %v572 = vpop.f32.mrb[0].mxu0
  %v573 = vadd.f32 %v130, %v572
  %v574 = vpop.f32.mrb[0].mxu0
  %v575 = vadd.f32 %v130, %v574
  %576 = vdwg.mxu0
  %577 = vmatprep.subr.mxu0 0.0
  %578 = vmatpush1.xpose.msra.mxu0 %v328
  %579 = vmatprep.subr.mxu0 0.0
  %580 = vmatpush1.xpose.msra.mxu0 %v331
  %581 = vmatprep.subr.mxu0 0.0
  %582 = vmatpush1.xpose.msra.mxu0 %v334
  %583 = vmatprep.subr.mxu0 0.0
  %584 = vmatpush1.xpose.msra.mxu0 %v337
  %585 = vmatprep.subr.mxu0 0.0
  %586 = vmatpush1.xpose.msra.mxu0 %v340
  %587 = vmatprep.subr.mxu0 0.0
  %588 = vmatpush1.xpose.msra.mxu0 %v343
  %589 = vmatprep.subr.mxu0 0.0
  %590 = vmatpush1.xpose.msra.mxu0 %v346
  %591 = vmatprep.subr.mxu0 0.0
  %592 = vmatpush1.xpose.msra.mxu0 %v349
  %593 = vmatprep.subr.mxu0 0.0
  %594 = vmatpush1.xpose.msra.mxu0 %v352
  %595 = vmatprep.subr.mxu0 0.0
  %596 = vmatpush1.xpose.msra.mxu0 %v355
  %597 = vmatprep.subr.mxu0 0.0
  %598 = vmatpush1.xpose.msra.mxu0 %v358
  %599 = vmatprep.subr.mxu0 0.0
  %600 = vmatpush1.xpose.msra.mxu0 %v361
  %601 = vmatprep.subr.mxu0 0.0
  %602 = vmatpush1.xpose.msra.mxu0 %v364
  %603 = vmatprep.subr.mxu0 0.0
  %604 = vmatpush1.xpose.msra.mxu0 %v367
  %605 = vmatprep.subr.mxu0 0.0
  %606 = vmatpush1.xpose.msra.mxu0 %v370
  %607 = vmatprep.subr.mxu0 0.0
  %608 = vmatpush1.xpose.msra.mxu0 %v373
  %609 = vmatprep.subr.mxu0 0.0
  %610 = vmatpush1.xpose.msra.mxu0 %v376
  %611 = vmatprep.subr.mxu0 0.0
  %612 = vmatpush1.xpose.msra.mxu0 %v379
  %613 = vmatprep.subr.mxu0 0.0
  %614 = vmatpush1.xpose.msra.mxu0 %v382
  %615 = vmatprep.subr.mxu0 0.0
  %616 = vmatpush1.xpose.msra.mxu0 %v385
  %617 = vmatprep.subr.mxu0 0.0
  %618 = vmatpush1.xpose.msra.mxu0 %v388
  %619 = vmatprep.subr.mxu0 0.0
  %620 = vmatpush1.xpose.msra.mxu0 %v391
  %621 = vmatprep.subr.mxu0 0.0
  %622 = vmatpush1.xpose.msra.mxu0 %v394
  %623 = vmatprep.subr.mxu0 0.0
  %624 = vmatpush1.xpose.msra.mxu0 %v397
  %625 = vmatprep.subr.mxu0 0.0
  %626 = vmatpush1.xpose.msra.mxu0 %v400
  %627 = vmatprep.subr.mxu0 0.0
  %628 = vmatpush1.xpose.msra.mxu0 %v403
  %629 = vmatprep.subr.mxu0 0.0
  %630 = vmatpush1.xpose.msra.mxu0 %v406
  %631 = vmatprep.subr.mxu0 0.0
  %632 = vmatpush1.xpose.msra.mxu0 %v409
  %633 = vmatprep.subr.mxu0 0.0
  %634 = vmatpush1.xpose.msra.mxu0 %v412
  %635 = vmatprep.subr.mxu0 0.0
  %636 = vmatpush1.xpose.msra.mxu0 %v415
  %637 = vmatprep.subr.mxu0 0.0
  %638 = vmatpush1.xpose.msra.mxu0 %v418
  %639 = vmatprep.subr.mxu0 0.0
  %640 = vmatpush1.xpose.msra.mxu0 %v421
  %641 = vmatprep.mubr.f32.mxu0 0.0
  %642 = vmatmul.mubr.f32.gmra.mrb[0].mxu0 %v133
  %v643 = vpop.f32.mrb[0].mxu0
  %v644 = vadd.f32 %v130, %v643
  %v645 = vpop.f32.mrb[0].mxu0
  %v646 = vadd.f32 %v130, %v645
  %647 = vdwg.mxu0
  %648 = vmatprep.subr.mxu0 0.0
  %649 = vmatpush1.xpose.msra.mxu0 %v424
  %650 = vmatprep.subr.mxu0 0.0
  %651 = vmatpush1.xpose.msra.mxu0 %v427
  %652 = vmatprep.subr.mxu0 0.0
  %653 = vmatpush1.xpose.msra.mxu0 %v430
  %654 = vmatprep.subr.mxu0 0.0
  %655 = vmatpush1.xpose.msra.mxu0 %v433
  %656 = vmatprep.subr.mxu0 0.0
  %657 = vmatpush1.xpose.msra.mxu0 0.0
  %658 = vmatprep.subr.mxu0 0.0
  %659 = vmatpush1.xpose.msra.mxu0 0.0
  %660 = vmatprep.subr.mxu0 0.0
  %661 = vmatpush1.xpose.msra.mxu0 0.0
  %662 = vmatprep.subr.mxu0 0.0
  %663 = vmatpush1.xpose.msra.mxu0 0.0
  %664 = vmatprep.subr.mxu0 0.0
  %665 = vmatpush1.xpose.msra.mxu0 0.0
  %666 = vmatprep.subr.mxu0 0.0
  %667 = vmatpush1.xpose.msra.mxu0 0.0
  %668 = vmatprep.subr.mxu0 0.0
  %669 = vmatpush1.xpose.msra.mxu0 0.0
  %670 = vmatprep.subr.mxu0 0.0
  %671 = vmatpush1.xpose.msra.mxu0 0.0
  %672 = vmatprep.subr.mxu0 0.0
  %673 = vmatpush1.xpose.msra.mxu0 0.0
  %674 = vmatprep.subr.mxu0 0.0
  %675 = vmatpush1.xpose.msra.mxu0 0.0
  %676 = vmatprep.subr.mxu0 0.0
  %677 = vmatpush1.xpose.msra.mxu0 0.0
  %678 = vmatprep.subr.mxu0 0.0
  %679 = vmatpush1.xpose.msra.mxu0 0.0
  %680 = vmatprep.subr.mxu0 0.0
  %681 = vmatpush1.xpose.msra.mxu0 0.0
  %682 = vmatprep.subr.mxu0 0.0
  %683 = vmatpush1.xpose.msra.mxu0 0.0
  %684 = vmatprep.subr.mxu0 0.0
  %685 = vmatpush1.xpose.msra.mxu0 0.0
  %686 = vmatprep.subr.mxu0 0.0
  %687 = vmatpush1.xpose.msra.mxu0 0.0
  %688 = vmatprep.subr.mxu0 0.0
  %689 = vmatpush1.xpose.msra.mxu0 0.0
  %690 = vmatprep.subr.mxu0 0.0
  %691 = vmatpush1.xpose.msra.mxu0 0.0
  %692 = vmatprep.subr.mxu0 0.0
  %693 = vmatpush1.xpose.msra.mxu0 0.0
  %694 = vmatprep.subr.mxu0 0.0
  %695 = vmatpush1.xpose.msra.mxu0 0.0
  %696 = vmatprep.subr.mxu0 0.0
  %697 = vmatpush1.xpose.msra.mxu0 0.0
  %698 = vmatprep.subr.mxu0 0.0
  %699 = vmatpush1.xpose.msra.mxu0 0.0
  %700 = vmatprep.subr.mxu0 0.0
  %701 = vmatpush1.xpose.msra.mxu0 0.0
  %702 = vmatprep.subr.mxu0 0.0
  %703 = vmatpush1.xpose.msra.mxu0 0.0
  %704 = vmatprep.subr.mxu0 0.0
  %705 = vmatpush1.xpose.msra.mxu0 0.0
  %706 = vmatprep.subr.mxu0 0.0
  %707 = vmatpush1.xpose.msra.mxu0 0.0
  %708 = vmatprep.subr.mxu0 0.0
  %709 = vmatpush1.xpose.msra.mxu0 0.0
  %710 = vmatprep.subr.mxu0 0.0
  %711 = vmatpush1.xpose.msra.mxu0 0.0
  %712 = vmatprep.mubr.f32.mxu0 0.0
  %713 = vmatmul.mubr.f32.gmra.mrb[0].mxu0 %v133
  %v714 = vpop.f32.mrb[0].mxu0
  %v715 = vadd.f32 %v130, %v714
  %v716 = vpop.f32.mrb[0].mxu0
  %717 = vdwg.mxu0
  %v718 = vxor.u32 %v502, 2147483648
  %v719 = vxor.u32 %v504, 2147483648
  %v720 = vxor.u32 %v573, 2147483648
  %v721 = vxor.u32 %v575, 2147483648
  %v722 = vxor.u32 %v644, 2147483648
  %v723 = vxor.u32 %v646, 2147483648
  %v724 = vxor.u32 %v715, 2147483648
  %v725 = vmul.f32 %v718, 1.442695
  %v726 = vpow.pop %v725
  %v727 = vmul.f32 %v719, 1.442695
  %v728 = vpow.pop %v727
  %v729 = vmul.f32 %v720, 1.442695
  %v730 = vpow.pop %v729
  %v731 = vmul.f32 %v721, 1.442695
  %v732 = vpow.pop %v731
  %v733 = vmul.f32 %v722, 1.442695
  %v734 = vpow.pop %v733
  %v735 = vmul.f32 %v723, 1.442695
  %v736 = vpow.pop %v735
  %v737 = vmul.f32 %v724, 1.442695
  %v738 = vpow.pop %v737
  %v739 = vadd.f32 %v726, 1.0
  %v740 = vadd.f32 %v728, 1.0
  %v741 = vadd.f32 %v730, 1.0
  %v742 = vadd.f32 %v732, 1.0
  %v743 = vadd.f32 %v734, 1.0
  %v744 = vadd.f32 %v736, 1.0
  %v745 = vadd.f32 %v738, 1.0
  %v746 = vrcp.pop %v739
  %v747 = vmul.f32 1.0, %v746
  %v748 = vrcp.pop %v740
  %v749 = vmul.f32 1.0, %v748
  %v750 = vrcp.pop %v741
  %v751 = vmul.f32 1.0, %v750
  %v752 = vrcp.pop %v742
  %v753 = vmul.f32 1.0, %v752
  %v754 = vrcp.pop %v743
  %v755 = vmul.f32 1.0, %v754
  %v756 = vrcp.pop %v744
  %v757 = vmul.f32 1.0, %v756
  %v758 = vrcp.pop %v745
  %v759 = vmul.f32 1.0, %v758
  %v761 = vlaneseq
  %v762 = vshrl.u32 %v761, 7
  %v763 = vsub.s32 0, %v762
  %v764 = vrot.slane %v120, %v763
  %v765 = vlaneseq
  %v766 = vshrl.u32 %v765, 7
  %v767 = vsub.s32 1, %v766
  %v768 = vrot.slane %v120, %v767
  %v769 = vlaneseq
  %v770 = vshrl.u32 %v769, 7
  %v771 = vsub.s32 2, %v770
  %v772 = vrot.slane %v120, %v771
  %v773 = vlaneseq
  %v774 = vshrl.u32 %v773, 7
  %v775 = vsub.s32 3, %v774
  %v776 = vrot.slane %v120, %v775
  %v777 = vlaneseq
  %v778 = vshrl.u32 %v777, 7
  %v779 = vsub.s32 4, %v778
  %v780 = vrot.slane %v120, %v779
  %v781 = vlaneseq
  %v782 = vshrl.u32 %v781, 7
  %v783 = vsub.s32 5, %v782
  %v784 = vrot.slane %v120, %v783
  %v785 = vlaneseq
  %v786 = vshrl.u32 %v785, 7
  %v787 = vsub.s32 6, %v786
  %v788 = vrot.slane %v120, %v787
  %v796 = vmul.f32 %v747, %v764
  %v797 = vmul.f32 %v749, %v768
  %v798 = vmul.f32 %v751, %v772
  %v799 = vmul.f32 %v753, %v776
  %v800 = vmul.f32 %v755, %v780
  %v801 = vmul.f32 %v757, %v784
  %v802 = vmul.f32 %v759, %v788
  %v810 = vcombine.low %v796, %v797
  %v811 = vcombine.low %v798, %v799
  %v812 = vcombine.low %v800, %v801
  %v814 = vunpack.c.l.s4 1966171168
  %v815 = vunpack.c.0.s8 %v814
  %v816 = vlaneseq
  %v817 = vshrl.u32 %v816, 7
  %v818 = vsub.s32 %v815, %v817
  %v819 = vrot.slane %v810, %v818
  %v821 = vunpack.c.l.s4 1966171168
  %v822 = vunpack.c.0.s8 %v821
  %v823 = vlaneseq
  %v824 = vshrl.u32 %v823, 7
  %v825 = vsub.s32 %v822, %v824
  %v826 = vrot.slane %v811, %v825
  %v828 = vunpack.c.l.s4 1966171168
  %v829 = vunpack.c.0.s8 %v828
  %v830 = vlaneseq
  %v831 = vshrl.u32 %v830, 7
  %v832 = vsub.s32 %v829, %v831
  %v833 = vrot.slane %v812, %v832
  %v835 = vunpack.c.l.s4 1966171168
  %v836 = vunpack.c.0.s8 %v835
  %v837 = vlaneseq
  %v838 = vshrl.u32 %v837, 7
  %v839 = vsub.s32 %v836, %v838
  %v840 = vrot.slane %v802, %v839
  %v841 = vcombine.low %v819, %v826
  %v842 = vcombine.low %v833, %v840
  %v844 = vunpack.c.l.s4 1966171168
  %v845 = vunpack.c.0.s8 %v844
  %v846 = vlaneseq
  %v847 = vshrl.u32 %v846, 7
  %v848 = vsub.s32 %v845, %v847
  %v849 = vrot.slane %v841, %v848
  %v851 = vunpack.c.l.s4 1966171168
  %v852 = vunpack.c.0.s8 %v851
  %v853 = vlaneseq
  %v854 = vshrl.u32 %v853, 7
  %v855 = vsub.s32 %v852, %v854
  %v856 = vrot.slane %v842, %v855
  %v857 = vcombine.low %v849, %v856
  %v859 = vlaneseq
  %vm860 = vcmp.ge.s32.totalorder %v859, 0
  %vm861 = vcmp.lt.s32.totalorder %v859, 800
  %vm862 = vmand %vm860, %vm861
  %863 = vst.msk [vmem:[%s4] sm:$0x7f] %vm862, %v857
  // Predicated region
  $region18: #{localization_forward.1} parent=0 // pred_check
    _
  $region19: #{localization_forward.1} parent=0 // pred_check_branch
    %865 = sbr.rel (0) target = $region21
  $region20: #{localization_forward.1} parent=0 // pred_region
    _
  $region21: #{localization_forward.1} parent=0 // pred_fallthru
    _
  // Predicated region
  $region22: #{localization_forward.1} parent=0 // pred_check
    _
  $region23: #{localization_forward.1} parent=0 // pred_check_branch
    %867 = sbr.rel (0) target = $region25
  $region24: #{localization_forward.1} parent=0 // pred_region
    _
  $region25: #{localization_forward.1} parent=0 // pred_fallthru
    _

</llo_original>
